<compile_context>
chip_gen: v7x
topology: tpu7x:2x2x1
jax: 0.10.0
libtpu: 0.0.40
codegen_flags: <defaults>
</compile_context>

<pallas_src>
import jax
import jax.numpy as jnp
from jax.experimental import pallas as pl
from jax.experimental.pallas import tpu as pltpu


def _fused_head_kernel(x3_ref, x4_ref, x5_ref, w_ref, b_ref, o_ref):
    # x3: (BN, C3, HW3), x4: (BN, C4, HW4), x5: (BN, C5, HW5)
    # w : (Cout, C3+C4+C5) packed per-head along Cin
    # b : (Cout, 3)        column j = bias of head j
    # o : (BN, Cout, OUT_W) lanes [0,HW3) | [HW3,HW3+HW4) | ... | zero pad
    bn, c3, hw3 = x3_ref.shape
    c4, hw4 = x4_ref.shape[1], x4_ref.shape[2]
    c5, hw5 = x5_ref.shape[1], x5_ref.shape[2]
    cout, out_w = o_ref.shape[1], o_ref.shape[2]
    pad_w = out_w - (hw3 + hw4 + hw5)

    w3 = w_ref[:, 0:c3]
    w4 = w_ref[:, c3:c3 + c4]
    w5 = w_ref[:, c3 + c4:c3 + c4 + c5]
    b3 = b_ref[:, 0:1]
    b4 = b_ref[:, 1:2]
    b5 = b_ref[:, 2:3]

    # Hoisted out of the batch loop (JAX does not CSE broadcasts).
    pad = jnp.zeros((cout, pad_w), jnp.float32) if pad_w > 0 else None

    for n in range(bn):  # static unroll; BN is small (<= batch)
        y3 = jnp.dot(w3, x3_ref[n], preferred_element_type=jnp.float32) + b3
        y4 = jnp.dot(w4, x4_ref[n], preferred_element_type=jnp.float32) + b4
        y5 = jnp.dot(w5, x5_ref[n], preferred_element_type=jnp.float32) + b5
        parts = [y3, y4, y5] + ([pad] if pad is not None else [])
        # One lane-dense (Cout, OUT_W) store per image.
        o_ref[n] = jnp.concatenate(parts, axis=-1).astype(o_ref.dtype)


def _default_batch_block(batch):
    """Fold the whole batch on single-TC chips; split across 2 TCs on v7x."""
    kind = ""
    try:
        kind = jax.devices()[0].device_kind.lower()
    except Exception:
        pass
    if "v7" in kind and batch >= 2 and batch % 2 == 0:
        return batch // 2          # 2 grid steps -> one per TensorCore
    return batch                   # grid=(1,): no per-image grid overhead


def yolo_head_forward(p3, p4, p5, params, *, batch_block=None):
    """Three 1x1 convs (NCHW in/out, PyTorch Conv2d(k=1) semantics), one call."""
    (w3, b3), (w4, b4), (w5, b5) = params
    assert p3.dtype == p4.dtype == p5.dtype, "heads expect a common input dtype"
    batch = p3.shape[0]
    cout = w3.shape[0]
    dt = p3.dtype

    feats, spatials, cins = [], [], []
    for x in (p3, p4, p5):
        n_, c, h, w_ = x.shape
        feats.append(x.reshape(n_, c, h * w_))     # reshape only, no transpose
        spatials.append((h, w_))
        cins.append(c)
    c3, c4, c5 = cins
    hw3, hw4, hw5 = [h * w_ for (h, w_) in spatials]
    total_hw = hw3 + hw4 + hw5
    out_w = max(128, ((total_hw + 127) // 128) * 128)   # lane-dense slab width

    # Pack params: (Cout, C3+C4+C5) and (Cout, 3).
    w_packed = jnp.concatenate(
        [w.reshape(cout, -1) for w in (w3, w4, w5)], axis=1)
    b_packed = jnp.stack([b3, b4, b5], axis=1)

    if batch_block is None:
        batch_block = _default_batch_block(batch)
    assert batch % batch_block == 0
    grid = (batch // batch_block,)

    def feat_spec(cin, hw):
        return pl.BlockSpec((batch_block, cin, hw), lambda n: (n, 0, 0))

    in_specs = [
        feat_spec(c3, hw3),
        feat_spec(c4, hw4),
        feat_spec(c5, hw5),
        pl.BlockSpec((cout, c3 + c4 + c5), lambda n: (0, 0)),  # resident weights
        pl.BlockSpec((cout, 3), lambda n: (0, 0)),             # resident biases
    ]
    out_specs = pl.BlockSpec((batch_block, cout, out_w), lambda n: (n, 0, 0))
    out_shape = jax.ShapeDtypeStruct((batch, cout, out_w), dt)

    itemsize = jnp.dtype(dt).itemsize
    flops = 2 * batch * cout * (c3 * hw3 + c4 * hw4 + c5 * hw5)
    bytes_accessed = (
        sum(int(f.size) * int(f.dtype.itemsize) for f in feats)
        + int(w_packed.size) * int(w_packed.dtype.itemsize)
        + int(b_packed.size) * int(b_packed.dtype.itemsize)
        + batch * cout * out_w * itemsize)

    slab = pl.pallas_call(
        _fused_head_kernel,
        out_shape=out_shape,
        grid_spec=pl.GridSpec(
            grid=grid,
            in_specs=in_specs,
            out_specs=out_specs,
        ),
        compiler_params=pltpu.CompilerParams(
            dimension_semantics=("parallel",)),
        cost_estimate=pl.CostEstimate(
            flops=flops, transcendentals=0, bytes_accessed=bytes_accessed),
    )(feats[0], feats[1], feats[2], w_packed, b_packed)

    (h3, w3s), (h4, w4s), (h5, w5s) = spatials
    o3 = slab[:, :, 0:hw3].reshape(batch, cout, h3, w3s)
    o4 = slab[:, :, hw3:hw3 + hw4].reshape(batch, cout, h4, w4s)
    o5 = slab[:, :, hw3 + hw4:hw3 + hw4 + hw5].reshape(batch, cout, h5, w5s)
    return o3, o4, o5


class YoloHeadPallas:
    def __init__(self, bc, anchors, nc, key):
        self.no = nc + 5
        self.na = len(anchors[0]) // 2
        cout = self.no * self.na
        cins = (bc * 4, bc * 8, bc * 16)
        keys = jax.random.split(key, 6)
        self.params = []
        for i, cin in enumerate(cins):
            # Mimics nn.Conv2d default init (uniform +/- 1/sqrt(fan_in)).
            bound = 1.0 / jnp.sqrt(jnp.float32(cin))
            w = jax.random.uniform(keys[2 * i], (cout, cin, 1, 1),
                                   jnp.float32, -bound, bound)
            b = jax.random.uniform(keys[2 * i + 1], (cout,),
                                   jnp.float32, -bound, bound)
            self.params.append((w, b))

    def __call__(self, p3, p4, p5):
        return yolo_head_forward(p3, p4, p5, self.params)


if __name__ == "__main__":
    key = jax.random.PRNGKey(0)
    k_in, k_params = jax.random.split(key)

    bc = 4
    anchors = [[10, 13, 16, 30, 33, 23]]  # na = 3
    nc = 2                                # no = 7 -> cout = 21
    batch = 2

    k3, k4, k5 = jax.random.split(k_in, 3)
    p3 = jax.random.normal(k3, (batch, bc * 4, 16, 16), jnp.float32)
    p4 = jax.random.normal(k4, (batch, bc * 8, 8, 8), jnp.float32)
    p5 = jax.random.normal(k5, (batch, bc * 16, 4, 4), jnp.float32)

    head = YoloHeadPallas(bc, anchors, nc, k_params)
    o3, o4, o5 = head(p3, p4, p5)
    jax.block_until_ready((o3, o4, o5))

    cout = head.no * head.na
    assert o3.shape == (batch, cout, 16, 16)
    assert o4.shape == (batch, cout, 8, 8)
    assert o5.shape == (batch, cout, 4, 4)

    # Cross-check against a plain-JAX reference (einsum 1x1 conv + bias).
    for x, (w, b), o in zip((p3, p4, p5), head.params, (o3, o4, o5)):
        ref = jnp.einsum("nchw,oc->nohw", x, w.reshape(cout, -1)) \
            + b[None, :, None, None]
        assert jnp.allclose(o, ref, atol=1e-4, rtol=1e-4)

    print("KERNEL_OK")
</pallas_src>

<mosaic_0001>
module attributes {stable_mosaic.version = 11 : i64} {
  func.func @_fused_head_kernel(%arg0: i32, %arg1: memref<2x16x256xf32, #tpu.memory_space<vmem>>, %arg2: memref<2x32x64xf32, #tpu.memory_space<vmem>>, %arg3: memref<2x64x16xf32, #tpu.memory_space<vmem>>, %arg4: memref<21x112xf32, #tpu.memory_space<vmem>>, %arg5: memref<21x3xf32, #tpu.memory_space<vmem>>, %arg6: memref<2x21x384xf32, #tpu.memory_space<vmem>>) attributes {dimension_semantics = [#tpu.dimension_semantics<parallel>], iteration_bounds = array<i64: 1>, scalar_prefetch = 0 : i64, scratch_operands = 0 : i64, tpu.core_type = #tpu.core_type<tc>, window_params = [{transform_indices = @transform_0, window_bounds = array<i64: 2, 16, 256>}, {transform_indices = @transform_1, window_bounds = array<i64: 2, 32, 64>}, {transform_indices = @transform_2, window_bounds = array<i64: 2, 64, 16>}, {pipeline_mode = #tpu.pipeline_mode<synchronous>, transform_indices = @transform_3, window_bounds = array<i64: 21, 112>}, {pipeline_mode = #tpu.pipeline_mode<synchronous>, transform_indices = @transform_4, window_bounds = array<i64: 21, 3>}, {transform_indices = @transform_5, window_bounds = array<i64: 2, 21, 384>}]} {
    %c0 = arith.constant 0 : index
    %c0_0 = arith.constant 0 : index
    %0 = vector.load %arg4[%c0, %c0_0] : memref<21x112xf32, #tpu.memory_space<vmem>>, vector<21x16xf32>
    %c0_1 = arith.constant 0 : index
    %c16 = arith.constant 16 : index
    %1 = vector.load %arg4[%c0_1, %c16] : memref<21x112xf32, #tpu.memory_space<vmem>>, vector<21x32xf32>
    %c0_2 = arith.constant 0 : index
    %c48 = arith.constant 48 : index
    %2 = vector.load %arg4[%c0_2, %c48] : memref<21x112xf32, #tpu.memory_space<vmem>>, vector<21x64xf32>
    %c0_3 = arith.constant 0 : index
    %c0_4 = arith.constant 0 : index
    %3 = vector.load %arg5[%c0_3, %c0_4] : memref<21x3xf32, #tpu.memory_space<vmem>>, vector<21x1xf32>
    %c0_5 = arith.constant 0 : index
    %c1 = arith.constant 1 : index
    %4 = vector.load %arg5[%c0_5, %c1] : memref<21x3xf32, #tpu.memory_space<vmem>>, vector<21x1xf32>
    %c0_6 = arith.constant 0 : index
    %c2 = arith.constant 2 : index
    %5 = vector.load %arg5[%c0_6, %c2] : memref<21x3xf32, #tpu.memory_space<vmem>>, vector<21x1xf32>
    %cst = arith.constant 0.000000e+00 : f32
    %6 = vector.broadcast %cst : f32 to vector<21x48xf32>
    %c0_7 = arith.constant 0 : index
    %c0_8 = arith.constant 0 : index
    %c0_9 = arith.constant 0 : index
    %7 = vector.load %arg1[%c0_7, %c0_8, %c0_9] : memref<2x16x256xf32, #tpu.memory_space<vmem>>, vector<1x16x256xf32>
    %8 = vector.shape_cast %7 : vector<1x16x256xf32> to vector<16x256xf32>
    %cst_10 = arith.constant dense<0.000000e+00> : vector<21x256xf32>
    %9 = tpu.matmul %0, %8, %cst_10 {dimension_numbers = #tpu.dot_dimension_numbers<[1], [0], [0], [1], [0, 0, 1, 1], [], []>} : vector<21x16xf32>, vector<16x256xf32>, vector<21x256xf32> -> vector<21x256xf32>
    %10 = vector.broadcast %3 : vector<21x1xf32> to vector<21x256xf32>
    %11 = arith.addf %9, %10 : vector<21x256xf32>
    %c0_11 = arith.constant 0 : index
    %c0_12 = arith.constant 0 : index
    %c0_13 = arith.constant 0 : index
    %12 = vector.load %arg2[%c0_11, %c0_12, %c0_13] : memref<2x32x64xf32, #tpu.memory_space<vmem>>, vector<1x32x64xf32>
    %13 = vector.shape_cast %12 : vector<1x32x64xf32> to vector<32x64xf32>
    %cst_14 = arith.constant dense<0.000000e+00> : vector<21x64xf32>
    %14 = tpu.matmul %1, %13, %cst_14 {dimension_numbers = #tpu.dot_dimension_numbers<[1], [0], [0], [1], [0, 0, 1, 1], [], []>} : vector<21x32xf32>, vector<32x64xf32>, vector<21x64xf32> -> vector<21x64xf32>
    %15 = vector.broadcast %4 : vector<21x1xf32> to vector<21x64xf32>
    %16 = arith.addf %14, %15 : vector<21x64xf32>
    %c0_15 = arith.constant 0 : index
    %c0_16 = arith.constant 0 : index
    %c0_17 = arith.constant 0 : index
    %17 = vector.load %arg3[%c0_15, %c0_16, %c0_17] : memref<2x64x16xf32, #tpu.memory_space<vmem>>, vector<1x64x16xf32>
    %18 = vector.shape_cast %17 : vector<1x64x16xf32> to vector<64x16xf32>
    %cst_18 = arith.constant dense<0.000000e+00> : vector<21x16xf32>
    %19 = tpu.matmul %2, %18, %cst_18 {dimension_numbers = #tpu.dot_dimension_numbers<[1], [0], [0], [1], [0, 0, 1, 1], [], []>} : vector<21x64xf32>, vector<64x16xf32>, vector<21x16xf32> -> vector<21x16xf32>
    %20 = vector.broadcast %5 : vector<21x1xf32> to vector<21x16xf32>
    %21 = arith.addf %19, %20 : vector<21x16xf32>
    %22 = tpu.concatenate %11, %16, %21, %6 in 1 : vector<21x256xf32>, vector<21x64xf32>, vector<21x16xf32>, vector<21x48xf32> -> vector<21x384xf32>
    %c0_19 = arith.constant 0 : index
    %c0_20 = arith.constant 0 : index
    %c0_21 = arith.constant 0 : index
    %23 = vector.load %arg6[%c0_19, %c0_20, %c0_21] : memref<2x21x384xf32, #tpu.memory_space<vmem>>, vector<1x21x384xf32>
    %24 = vector.shape_cast %23 : vector<1x21x384xf32> to vector<21x384xf32>
    %25 = vector.shape_cast %22 : vector<21x384xf32> to vector<1x21x384xf32>
    tpu.vector_store %arg6[%c0_19, %c0_20, %c0_21], %25 {strides = array<i32>} : memref<2x21x384xf32, #tpu.memory_space<vmem>>, vector<1x21x384xf32>,
    %c1_22 = arith.constant 1 : index
    %c0_23 = arith.constant 0 : index
    %c0_24 = arith.constant 0 : index
    %26 = vector.load %arg1[%c1_22, %c0_23, %c0_24] : memref<2x16x256xf32, #tpu.memory_space<vmem>>, vector<1x16x256xf32>
    %27 = vector.shape_cast %26 : vector<1x16x256xf32> to vector<16x256xf32>
    %cst_25 = arith.constant dense<0.000000e+00> : vector<21x256xf32>
    %28 = tpu.matmul %0, %27, %cst_25 {dimension_numbers = #tpu.dot_dimension_numbers<[1], [0], [0], [1], [0, 0, 1, 1], [], []>} : vector<21x16xf32>, vector<16x256xf32>, vector<21x256xf32> -> vector<21x256xf32>
    %29 = vector.broadcast %3 : vector<21x1xf32> to vector<21x256xf32>
    %30 = arith.addf %28, %29 : vector<21x256xf32>
    %c1_26 = arith.constant 1 : index
    %c0_27 = arith.constant 0 : index
    %c0_28 = arith.constant 0 : index
    %31 = vector.load %arg2[%c1_26, %c0_27, %c0_28] : memref<2x32x64xf32, #tpu.memory_space<vmem>>, vector<1x32x64xf32>
    %32 = vector.shape_cast %31 : vector<1x32x64xf32> to vector<32x64xf32>
    %cst_29 = arith.constant dense<0.000000e+00> : vector<21x64xf32>
    %33 = tpu.matmul %1, %32, %cst_29 {dimension_numbers = #tpu.dot_dimension_numbers<[1], [0], [0], [1], [0, 0, 1, 1], [], []>} : vector<21x32xf32>, vector<32x64xf32>, vector<21x64xf32> -> vector<21x64xf32>
    %34 = vector.broadcast %4 : vector<21x1xf32> to vector<21x64xf32>
    %35 = arith.addf %33, %34 : vector<21x64xf32>
    %c1_30 = arith.constant 1 : index
    %c0_31 = arith.constant 0 : index
    %c0_32 = arith.constant 0 : index
    %36 = vector.load %arg3[%c1_30, %c0_31, %c0_32] : memref<2x64x16xf32, #tpu.memory_space<vmem>>, vector<1x64x16xf32>
    %37 = vector.shape_cast %36 : vector<1x64x16xf32> to vector<64x16xf32>
    %cst_33 = arith.constant dense<0.000000e+00> : vector<21x16xf32>
    %38 = tpu.matmul %2, %37, %cst_33 {dimension_numbers = #tpu.dot_dimension_numbers<[1], [0], [0], [1], [0, 0, 1, 1], [], []>} : vector<21x64xf32>, vector<64x16xf32>, vector<21x16xf32> -> vector<21x16xf32>
    %39 = vector.broadcast %5 : vector<21x1xf32> to vector<21x16xf32>
    %40 = arith.addf %38, %39 : vector<21x16xf32>
    %41 = tpu.concatenate %30, %35, %40, %6 in 1 : vector<21x256xf32>, vector<21x64xf32>, vector<21x16xf32>, vector<21x48xf32> -> vector<21x384xf32>
    %c1_34 = arith.constant 1 : index
    %c0_35 = arith.constant 0 : index
    %c0_36 = arith.constant 0 : index
    %42 = vector.load %arg6[%c1_34, %c0_35, %c0_36] : memref<2x21x384xf32, #tpu.memory_space<vmem>>, vector<1x21x384xf32>
    %43 = vector.shape_cast %42 : vector<1x21x384xf32> to vector<21x384xf32>
    %44 = vector.shape_cast %41 : vector<21x384xf32> to vector<1x21x384xf32>
    tpu.vector_store %arg6[%c1_34, %c0_35, %c0_36], %44 {strides = array<i32>} : memref<2x21x384xf32, #tpu.memory_space<vmem>>, vector<1x21x384xf32>,
    return
  }
  func.func @transform_0(%arg0: i32) -> (i32, i32, i32) {
    %c0_i32 = arith.constant 0 : i32
    %c0_i32_0 = arith.constant 0 : i32
    %c0_i32_1 = arith.constant 0 : i32
    return %arg0, %c0_i32, %c0_i32_0 : i32, i32, i32
  }
  func.func @transform_1(%arg0: i32) -> (i32, i32, i32) {
    %c0_i32 = arith.constant 0 : i32
    %c0_i32_0 = arith.constant 0 : i32
    %c0_i32_1 = arith.constant 0 : i32
    return %arg0, %c0_i32, %c0_i32_0 : i32, i32, i32
  }
  func.func @transform_2(%arg0: i32) -> (i32, i32, i32) {
    %c0_i32 = arith.constant 0 : i32
    %c0_i32_0 = arith.constant 0 : i32
    %c0_i32_1 = arith.constant 0 : i32
    return %arg0, %c0_i32, %c0_i32_0 : i32, i32, i32
  }
  func.func @transform_3(%arg0: i32) -> (i32, i32) {
    %c0_i32 = arith.constant 0 : i32
    %c0_i32_0 = arith.constant 0 : i32
    %c0_i32_1 = arith.constant 0 : i32
    return %c0_i32, %c0_i32_0 : i32, i32
  }
  func.func @transform_4(%arg0: i32) -> (i32, i32) {
    %c0_i32 = arith.constant 0 : i32
    %c0_i32_0 = arith.constant 0 : i32
    %c0_i32_1 = arith.constant 0 : i32
    return %c0_i32, %c0_i32_0 : i32, i32
  }
  func.func @transform_5(%arg0: i32) -> (i32, i32, i32) {
    %c0_i32 = arith.constant 0 : i32
    %c0_i32_0 = arith.constant 0 : i32
    %c0_i32_1 = arith.constant 0 : i32
    return %arg0, %c0_i32, %c0_i32_0 : i32, i32, i32
  }
}

</mosaic_0001>

<llo_original>
// kernel: tpu_custom_call.1
$region0: #{tpu_custom_call.1}
  #allocation0 [shape = 'u32[]', space=smem, size = 0x4, offset = 0x4, fixed_abs, tag = 'smem constant byte address 0x4 - core index']
  #allocation1 [shape = 'u32[144,128]{1,0:T(1,128)}', space=vmem, size = 0x12000, scoped, tag = 'internal scratch']
  %s0 = inlined_call_operand.vmem [shape: f32[2,16,256], index: 0, kind: input, shape index: {}]
  %s1 = inlined_call_operand.vmem [shape: f32[2,32,64], index: 1, kind: input, shape index: {}]
  %s2 = inlined_call_operand.vmem [shape: f32[2,64,16], index: 2, kind: input, shape index: {}]
  %s3 = inlined_call_operand.vmem [shape: f32[21,112], index: 3, kind: input, shape index: {}]
  %s4 = inlined_call_operand.vmem [shape: f32[21,3], index: 4, kind: input, shape index: {}]
  %s5 = inlined_call_operand.vmem [shape: f32[2,21,384], index: 5, kind: output, shape index: {}]
  %s6 = sld [smem:[#allocation0]]
  $region30: #{tpu_custom_call.1} parent=0
    _
  %s8 = ssub.s32 1, %s6
  %s9 = scalar_select 0, %s8, %s6
  // Predicated region
  $region2: #{tpu_custom_call.1} parent=0 // pred_check
    _
  $region3: #{tpu_custom_call.1} parent=0 // pred_check_branch
    %11 = sbr.rel (0) target = $region5
  $region4: #{tpu_custom_call.1} parent=0 // pred_region
    _
  $region5: #{tpu_custom_call.1} parent=0 // pred_fallthru
    _
  // Predicated region
  $region6: #{tpu_custom_call.1} parent=0 // pred_check
    _
  $region7: #{tpu_custom_call.1} parent=0 // pred_check_branch
    %13 = sbr.rel (0) target = $region9
  $region8: #{tpu_custom_call.1} parent=0 // pred_region
    _
  $region9: #{tpu_custom_call.1} parent=0 // pred_fallthru
    _
  // Predicated region
  $region10: #{tpu_custom_call.1} parent=0 // pred_check
    _
  $region11: #{tpu_custom_call.1} parent=0 // pred_check_branch
    %15 = sbr.rel (0) target = $region13
  $region12: #{tpu_custom_call.1} parent=0 // pred_region
    _
  $region13: #{tpu_custom_call.1} parent=0 // pred_fallthru
    _
  // Predicated region
  $region14: #{tpu_custom_call.1} parent=0 // pred_check
    _
  $region15: #{tpu_custom_call.1} parent=0 // pred_check_branch
    %17 = sbr.rel (0) target = $region17
  $region16: #{tpu_custom_call.1} parent=0 // pred_region
    _
  $region17: #{tpu_custom_call.1} parent=0 // pred_fallthru
    _
  // Predicated region
  $region18: #{tpu_custom_call.1} parent=0 // pred_check
    _
  $region19: #{tpu_custom_call.1} parent=0 // pred_check_branch
    %19 = sbr.rel (0) target = $region21
  $region20: #{tpu_custom_call.1} parent=0 // pred_region
    _
  $region21: #{tpu_custom_call.1} parent=0 // pred_fallthru
    _
  %v20 = vld [vmem:[%s3] sm:$0xff]
  %v21 = vld [vmem:[%s3 + $0x8] sm:$0xff]
  %v22 = vld [vmem:[%s3 + $0x10] sm:$0x1f]
  %v23 = vld [vmem:[%s4] sm:$0xff]
  %v24 = vld [vmem:[%s4 + $0x8] sm:$0xff]
  %v25 = vld [vmem:[%s4 + $0x10] sm:$0x1f]
  %v26 = vld [vmem:[%s0] sm:$0xff]
  %v27 = vld [vmem:[%s0 + $0x8] sm:$0xff]
  %v28 = vld [vmem:[%s0 + $0x10] sm:$0xff]
  %v29 = vld [vmem:[%s0 + $0x18] sm:$0xff]
  %31 = vset.pattern.permute.xlu0 0
  %32 = vperm.xlu0 %31, %v23
  %v33 = vpop.permute.xlu0 %32
  %36 = vset.pattern.permute.xlu0 0
  %37 = vperm.xlu0 %36, %v24
  %v38 = vpop.permute.xlu0 %37
  %41 = vset.pattern.permute.xlu0 0
  %42 = vperm.xlu0 %41, %v25
  %v43 = vpop.permute.xlu0 %42
  %vm45 = vcmask 130048
  %v47 = vsel %vm45, %v20, 0
  %v50 = vsel %vm45, %v21, 0
  %v53 = vsel %vm45, %v22, 0
  %55 = vmatprep.subr.mxu0 %v27
  %56 = vmatpush1.msra.mxu0 %v26
  %57 = vmatprep.subr.mxu0 %v29
  %58 = vmatpush1.msra.mxu0 %v28
  %59 = vmatprep.subr.mxu0 0.0
  %60 = vmatpush1.msra.mxu0 0.0
  %61 = vmatprep.subr.mxu0 0.0
  %62 = vmatpush1.msra.mxu0 0.0
  %63 = vmatprep.subr.mxu0 0.0
  %64 = vmatpush1.msra.mxu0 0.0
  %65 = vmatprep.subr.mxu0 0.0
  %66 = vmatpush1.msra.mxu0 0.0
  %67 = vmatprep.subr.mxu0 0.0
  %68 = vmatpush1.msra.mxu0 0.0
  %69 = vmatprep.subr.mxu0 0.0
  %70 = vmatpush1.msra.mxu0 0.0
  %71 = vmatprep.subr.mxu0 0.0
  %72 = vmatpush1.msra.mxu0 0.0
  %73 = vmatprep.subr.mxu0 0.0
  %74 = vmatpush1.msra.mxu0 0.0
  %75 = vmatprep.subr.mxu0 0.0
  %76 = vmatpush1.msra.mxu0 0.0
  %77 = vmatprep.subr.mxu0 0.0
  %78 = vmatpush1.msra.mxu0 0.0
  %79 = vmatprep.subr.mxu0 0.0
  %80 = vmatpush1.msra.mxu0 0.0
  %81 = vmatprep.subr.mxu0 0.0
  %82 = vmatpush1.msra.mxu0 0.0
  %83 = vmatprep.subr.mxu0 0.0
  %84 = vmatpush1.msra.mxu0 0.0
  %85 = vmatprep.subr.mxu0 0.0
  %86 = vmatpush1.msra.mxu0 0.0
  %87 = vmatprep.subr.mxu0 0.0
  %88 = vmatpush1.msra.mxu0 0.0
  %89 = vmatprep.subr.mxu0 0.0
  %90 = vmatpush1.msra.mxu0 0.0
  %91 = vmatprep.subr.mxu0 0.0
  %92 = vmatpush1.msra.mxu0 0.0
  %93 = vmatprep.subr.mxu0 0.0
  %94 = vmatpush1.msra.mxu0 0.0
  %95 = vmatprep.subr.mxu0 0.0
  %96 = vmatpush1.msra.mxu0 0.0
  %97 = vmatprep.subr.mxu0 0.0
  %98 = vmatpush1.msra.mxu0 0.0
  %99 = vmatprep.subr.mxu0 0.0
  %100 = vmatpush1.msra.mxu0 0.0
  %101 = vmatprep.subr.mxu0 0.0
  %102 = vmatpush1.msra.mxu0 0.0
  %103 = vmatprep.subr.mxu0 0.0
  %104 = vmatpush1.msra.mxu0 0.0
  %105 = vmatprep.subr.mxu0 0.0
  %106 = vmatpush1.msra.mxu0 0.0
  %107 = vmatprep.subr.mxu0 0.0
  %108 = vmatpush1.msra.mxu0 0.0
  %109 = vmatprep.subr.mxu0 0.0
  %110 = vmatpush1.msra.mxu0 0.0
  %111 = vmatprep.subr.mxu0 0.0
  %112 = vmatpush1.msra.mxu0 0.0
  %113 = vmatprep.subr.mxu0 0.0
  %114 = vmatpush1.msra.mxu0 0.0
  %115 = vmatprep.subr.mxu0 0.0
  %116 = vmatpush1.msra.mxu0 0.0
  %117 = vmatprep.subr.mxu0 0.0
  %118 = vmatpush1.msra.mxu0 0.0
  %119 = vmatprep.mubr.f32.mxu0 0.0
  %120 = vmatmul.mubr.f32.gmra.mrb[0].mxu0 %v47
  %v121 = vpop.f32.mrb[0].mxu0
  %v122 = vadd.f32 %v33, %v121
  %v123 = vpop.f32.mrb[0].mxu0
  %v124 = vadd.f32 %v33, %v123
  %125 = vmatprep.mubr.f32.mxu0 0.0
  %126 = vmatmul.mubr.f32.gmra.mrb[0].mxu0 %v50
  %v127 = vpop.f32.mrb[0].mxu0
  %v128 = vadd.f32 %v38, %v127
  %v129 = vpop.f32.mrb[0].mxu0
  %v130 = vadd.f32 %v38, %v129
  %131 = vmatprep.mubr.f32.mxu0 0.0
  %132 = vmatmul.mubr.f32.gmra.mrb[0].mxu0 %v53
  %v133 = vpop.f32.mrb[0].mxu0
  %v134 = vadd.f32 %v43, %v133
  %v135 = vpop.f32.mrb[0].mxu0
  %v136 = vadd.f32 %v43, %v135
  %137 = vdwg.mxu0
  %v138 = vld [vmem:[%s1] sm:$0xff]
  %v139 = vld [vmem:[%s1 + $0x8] sm:$0xff]
  %v140 = vld [vmem:[%s1 + $0x10] sm:$0xff]
  %v141 = vld [vmem:[%s1 + $0x18] sm:$0xff]
  %142 = vset.pattern.permute.xlu0 1
  %143 = vperm.xlu0 %142, %v23
  %v144 = vpop.permute.xlu0 %143
  %146 = vset.pattern.permute.xlu0 1
  %147 = vperm.xlu0 %146, %v24
  %v148 = vpop.permute.xlu0 %147
  %150 = vset.pattern.permute.xlu0 1
  %151 = vperm.xlu0 %150, %v25
  %v152 = vpop.permute.xlu0 %151
  %154 = vrot.lane.b32.xlu0 %v20, 112
  %v155 = vpop.permute.xlu0 %154
  %156 = vrot.lane.b32.xlu0 %v21, 112
  %v157 = vpop.permute.xlu0 %156
  %158 = vrot.lane.b32.xlu0 %v22, 112
  %v159 = vpop.permute.xlu0 %158
  %vm160 = vcmask 261120
  %v161 = vsel %vm160, %v155, 0
  %v163 = vsel %vm160, %v157, 0
  %v165 = vsel %vm160, %v159, 0
  %167 = vmatprep.subr.mxu0 0.0
  %168 = vmatpush1.msra.mxu0 %v138
  %169 = vmatprep.subr.mxu0 0.0
  %170 = vmatpush1.msra.mxu0 %v139
  %171 = vmatprep.subr.mxu0 0.0
  %172 = vmatpush1.msra.mxu0 %v140
  %173 = vmatprep.subr.mxu0 0.0
  %174 = vmatpush1.msra.mxu0 %v141
  %175 = vmatprep.subr.mxu0 0.0
  %176 = vmatpush1.msra.mxu0 0.0
  %177 = vmatprep.subr.mxu0 0.0
  %178 = vmatpush1.msra.mxu0 0.0
  %179 = vmatprep.subr.mxu0 0.0
  %180 = vmatpush1.msra.mxu0 0.0
  %181 = vmatprep.subr.mxu0 0.0
  %182 = vmatpush1.msra.mxu0 0.0
  %183 = vmatprep.subr.mxu0 0.0
  %184 = vmatpush1.msra.mxu0 0.0
  %185 = vmatprep.subr.mxu0 0.0
  %186 = vmatpush1.msra.mxu0 0.0
  %187 = vmatprep.subr.mxu0 0.0
  %188 = vmatpush1.msra.mxu0 0.0
  %189 = vmatprep.subr.mxu0 0.0
  %190 = vmatpush1.msra.mxu0 0.0
  %191 = vmatprep.subr.mxu0 0.0
  %192 = vmatpush1.msra.mxu0 0.0
  %193 = vmatprep.subr.mxu0 0.0
  %194 = vmatpush1.msra.mxu0 0.0
  %195 = vmatprep.subr.mxu0 0.0
  %196 = vmatpush1.msra.mxu0 0.0
  %197 = vmatprep.subr.mxu0 0.0
  %198 = vmatpush1.msra.mxu0 0.0
  %199 = vmatprep.subr.mxu0 0.0
  %200 = vmatpush1.msra.mxu0 0.0
  %201 = vmatprep.subr.mxu0 0.0
  %202 = vmatpush1.msra.mxu0 0.0
  %203 = vmatprep.subr.mxu0 0.0
  %204 = vmatpush1.msra.mxu0 0.0
  %205 = vmatprep.subr.mxu0 0.0
  %206 = vmatpush1.msra.mxu0 0.0
  %207 = vmatprep.subr.mxu0 0.0
  %208 = vmatpush1.msra.mxu0 0.0
  %209 = vmatprep.subr.mxu0 0.0
  %210 = vmatpush1.msra.mxu0 0.0
  %211 = vmatprep.subr.mxu0 0.0
  %212 = vmatpush1.msra.mxu0 0.0
  %213 = vmatprep.subr.mxu0 0.0
  %214 = vmatpush1.msra.mxu0 0.0
  %215 = vmatprep.subr.mxu0 0.0
  %216 = vmatpush1.msra.mxu0 0.0
  %217 = vmatprep.subr.mxu0 0.0
  %218 = vmatpush1.msra.mxu0 0.0
  %219 = vmatprep.subr.mxu0 0.0
  %220 = vmatpush1.msra.mxu0 0.0
  %221 = vmatprep.subr.mxu0 0.0
  %222 = vmatpush1.msra.mxu0 0.0
  %223 = vmatprep.subr.mxu0 0.0
  %224 = vmatpush1.msra.mxu0 0.0
  %225 = vmatprep.subr.mxu0 0.0
  %226 = vmatpush1.msra.mxu0 0.0
  %227 = vmatprep.subr.mxu0 0.0
  %228 = vmatpush1.msra.mxu0 0.0
  %229 = vmatprep.subr.mxu0 0.0
  %230 = vmatpush1.msra.mxu0 0.0
  %231 = vmatprep.mubr.f32.mxu0 0.0
  %232 = vmatmul.mubr.f32.gmra.mrb[0].mxu0 %v161
  %v233 = vpop.f32.mrb[0].mxu0
  %v234 = vadd.f32 %v144, %v233
  %v235 = vpop.f32.mrb[0].mxu0
  %236 = vmatprep.mubr.f32.mxu0 0.0
  %237 = vmatmul.mubr.f32.gmra.mrb[0].mxu0 %v163
  %v238 = vpop.f32.mrb[0].mxu0
  %v239 = vadd.f32 %v148, %v238
  %v240 = vpop.f32.mrb[0].mxu0
  %241 = vmatprep.mubr.f32.mxu0 0.0
  %242 = vmatmul.mubr.f32.gmra.mrb[0].mxu0 %v165
  %v243 = vpop.f32.mrb[0].mxu0
  %v244 = vadd.f32 %v152, %v243
  %v245 = vpop.f32.mrb[0].mxu0
  %246 = vdwg.mxu0
  %v247 = vld [vmem:[%s2] sm:$0xff]
  %v248 = vld [vmem:[%s2 + $0x8] sm:$0xff]
  %v249 = vld [vmem:[%s2 + $0x10] sm:$0xff]
  %v250 = vld [vmem:[%s2 + $0x18] sm:$0xff]
  %v251 = vld [vmem:[%s2 + $0x20] sm:$0xff]
  %v252 = vld [vmem:[%s2 + $0x28] sm:$0xff]
  %v253 = vld [vmem:[%s2 + $0x30] sm:$0xff]
  %v254 = vld [vmem:[%s2 + $0x38] sm:$0xff]
  %255 = vset.pattern.permute.xlu0 2
  %256 = vperm.xlu0 %255, %v23
  %v257 = vpop.permute.xlu0 %256
  %259 = vset.pattern.permute.xlu0 2
  %260 = vperm.xlu0 %259, %v24
  %v261 = vpop.permute.xlu0 %260
  %263 = vset.pattern.permute.xlu0 2
  %264 = vperm.xlu0 %263, %v25
  %v265 = vpop.permute.xlu0 %264
  %267 = vrot.lane.b32.xlu0 %v20, 80
  %v268 = vpop.permute.xlu0 %267
  %269 = vrot.lane.b32.xlu0 %v21, 80
  %v270 = vpop.permute.xlu0 %269
  %271 = vrot.lane.b32.xlu0 %v22, 80
  %v272 = vpop.permute.xlu0 %271
  %vm273 = vcmask 523264
  %v274 = vsel %vm273, %v268, 0
  %v276 = vsel %vm273, %v270, 0
  %v278 = vsel %vm273, %v272, 0
  %280 = vmatprep.subr.mxu0 0.0
  %281 = vmatpush1.msra.mxu0 %v247
  %282 = vmatprep.subr.mxu0 0.0
  %283 = vmatpush1.msra.mxu0 %v248
  %284 = vmatprep.subr.mxu0 0.0
  %285 = vmatpush1.msra.mxu0 %v249
  %286 = vmatprep.subr.mxu0 0.0
  %287 = vmatpush1.msra.mxu0 %v250
  %288 = vmatprep.subr.mxu0 0.0
  %289 = vmatpush1.msra.mxu0 %v251
  %290 = vmatprep.subr.mxu0 0.0
  %291 = vmatpush1.msra.mxu0 %v252
  %292 = vmatprep.subr.mxu0 0.0
  %293 = vmatpush1.msra.mxu0 %v253
  %294 = vmatprep.subr.mxu0 0.0
  %295 = vmatpush1.msra.mxu0 %v254
  %296 = vmatprep.subr.mxu0 0.0
  %297 = vmatpush1.msra.mxu0 0.0
  %298 = vmatprep.subr.mxu0 0.0
  %299 = vmatpush1.msra.mxu0 0.0
  %300 = vmatprep.subr.mxu0 0.0
  %301 = vmatpush1.msra.mxu0 0.0
  %302 = vmatprep.subr.mxu0 0.0
  %303 = vmatpush1.msra.mxu0 0.0
  %304 = vmatprep.subr.mxu0 0.0
  %305 = vmatpush1.msra.mxu0 0.0
  %306 = vmatprep.subr.mxu0 0.0
  %307 = vmatpush1.msra.mxu0 0.0
  %308 = vmatprep.subr.mxu0 0.0
  %309 = vmatpush1.msra.mxu0 0.0
  %310 = vmatprep.subr.mxu0 0.0
  %311 = vmatpush1.msra.mxu0 0.0
  %312 = vmatprep.subr.mxu0 0.0
  %313 = vmatpush1.msra.mxu0 0.0
  %314 = vmatprep.subr.mxu0 0.0
  %315 = vmatpush1.msra.mxu0 0.0
  %316 = vmatprep.subr.mxu0 0.0
  %317 = vmatpush1.msra.mxu0 0.0
  %318 = vmatprep.subr.mxu0 0.0
  %319 = vmatpush1.msra.mxu0 0.0
  %320 = vmatprep.subr.mxu0 0.0
  %321 = vmatpush1.msra.mxu0 0.0
  %322 = vmatprep.subr.mxu0 0.0
  %323 = vmatpush1.msra.mxu0 0.0
  %324 = vmatprep.subr.mxu0 0.0
  %325 = vmatpush1.msra.mxu0 0.0
  %326 = vmatprep.subr.mxu0 0.0
  %327 = vmatpush1.msra.mxu0 0.0
  %328 = vmatprep.subr.mxu0 0.0
  %329 = vmatpush1.msra.mxu0 0.0
  %330 = vmatprep.subr.mxu0 0.0
  %331 = vmatpush1.msra.mxu0 0.0
  %332 = vmatprep.subr.mxu0 0.0
  %333 = vmatpush1.msra.mxu0 0.0
  %334 = vmatprep.subr.mxu0 0.0
  %335 = vmatpush1.msra.mxu0 0.0
  %336 = vmatprep.subr.mxu0 0.0
  %337 = vmatpush1.msra.mxu0 0.0
  %338 = vmatprep.subr.mxu0 0.0
  %339 = vmatpush1.msra.mxu0 0.0
  %340 = vmatprep.subr.mxu0 0.0
  %341 = vmatpush1.msra.mxu0 0.0
  %342 = vmatprep.subr.mxu0 0.0
  %343 = vmatpush1.msra.mxu0 0.0
  %344 = vmatprep.mubr.f32.mxu0 0.0
  %345 = vmatmul.mubr.f32.gmra.mrb[0].mxu0 %v274
  %v346 = vpop.f32.mrb[0].mxu0
  %v347 = vadd.f32 %v257, %v346
  %v348 = vpop.f32.mrb[0].mxu0
  %349 = vmatprep.mubr.f32.mxu0 0.0
  %350 = vmatmul.mubr.f32.gmra.mrb[0].mxu0 %v276
  %v351 = vpop.f32.mrb[0].mxu0
  %v352 = vadd.f32 %v261, %v351
  %v353 = vpop.f32.mrb[0].mxu0
  %354 = vmatprep.mubr.f32.mxu0 0.0
  %355 = vmatmul.mubr.f32.gmra.mrb[0].mxu0 %v278
  %v356 = vpop.f32.mrb[0].mxu0
  %v357 = vadd.f32 %v265, %v356
  %v358 = vpop.f32.mrb[0].mxu0
  %359 = vdwg.mxu0
  %363 = vrot.lane.b32.xlu0 %v347, 64
  %v364 = vpop.permute.xlu0 %363
  %365 = vrot.lane.b32.xlu0 %v352, 64
  %v366 = vpop.permute.xlu0 %365
  %367 = vrot.lane.b32.xlu0 %v357, 64
  %v368 = vpop.permute.xlu0 %367
  %v372 = vsel %vm273, %v234, %v364
  %v373 = vsel %vm273, %v239, %v366
  %v374 = vsel %vm273, %v244, %v368
  %vm375 = vcmask 654336
  %v376 = vsel %vm375, %v372, 0.0
  %v377 = vsel %vm375, %v373, 0.0
  %v378 = vsel %vm375, %v374, 0.0
  %379 = vst [vmem:[%s5] sm:$0xff] %v122
  %380 = vst [vmem:[%s5 + $0x8] sm:$0xff] %v124
  %381 = vst [vmem:[%s5 + $0x10] sm:$0xff] %v376
  %382 = vst [vmem:[%s5 + $0x18] sm:$0xff] %v128
  %383 = vst [vmem:[%s5 + $0x20] sm:$0xff] %v130
  %384 = vst [vmem:[%s5 + $0x28] sm:$0xff] %v377
  %385 = vst [vmem:[%s5 + $0x30] sm:$0x1f] %v134
  %386 = vst [vmem:[%s5 + $0x38] sm:$0x1f] %v136
  %387 = vst [vmem:[%s5 + $0x40] sm:$0x1f] %v378
  %s388 = scalar_lea.vmem %s0, 32
  %v389 = vld [vmem:[%s388] sm:$0xff]
  %v390 = vld [vmem:[%s388 + $0x8] sm:$0xff]
  %v391 = vld [vmem:[%s388 + $0x10] sm:$0xff]
  %v392 = vld [vmem:[%s388 + $0x18] sm:$0xff]
  %393 = vmatprep.subr.mxu0 %v390
  %394 = vmatpush1.msra.mxu0 %v389
  %395 = vmatprep.subr.mxu0 %v392
  %396 = vmatpush1.msra.mxu0 %v391
  %397 = vmatprep.subr.mxu0 0.0
  %398 = vmatpush1.msra.mxu0 0.0
  %399 = vmatprep.subr.mxu0 0.0
  %400 = vmatpush1.msra.mxu0 0.0
  %401 = vmatprep.subr.mxu0 0.0
  %402 = vmatpush1.msra.mxu0 0.0
  %403 = vmatprep.subr.mxu0 0.0
  %404 = vmatpush1.msra.mxu0 0.0
  %405 = vmatprep.subr.mxu0 0.0
  %406 = vmatpush1.msra.mxu0 0.0
  %407 = vmatprep.subr.mxu0 0.0
  %408 = vmatpush1.msra.mxu0 0.0
  %409 = vmatprep.subr.mxu0 0.0
  %410 = vmatpush1.msra.mxu0 0.0
  %411 = vmatprep.subr.mxu0 0.0
  %412 = vmatpush1.msra.mxu0 0.0
  %413 = vmatprep.subr.mxu0 0.0
  %414 = vmatpush1.msra.mxu0 0.0
  %415 = vmatprep.subr.mxu0 0.0
  %416 = vmatpush1.msra.mxu0 0.0
  %417 = vmatprep.subr.mxu0 0.0
  %418 = vmatpush1.msra.mxu0 0.0
  %419 = vmatprep.subr.mxu0 0.0
  %420 = vmatpush1.msra.mxu0 0.0
  %421 = vmatprep.subr.mxu0 0.0
  %422 = vmatpush1.msra.mxu0 0.0
  %423 = vmatprep.subr.mxu0 0.0
  %424 = vmatpush1.msra.mxu0 0.0
  %425 = vmatprep.subr.mxu0 0.0
  %426 = vmatpush1.msra.mxu0 0.0
  %427 = vmatprep.subr.mxu0 0.0
  %428 = vmatpush1.msra.mxu0 0.0
  %429 = vmatprep.subr.mxu0 0.0
  %430 = vmatpush1.msra.mxu0 0.0
  %431 = vmatprep.subr.mxu0 0.0
  %432 = vmatpush1.msra.mxu0 0.0
  %433 = vmatprep.subr.mxu0 0.0
  %434 = vmatpush1.msra.mxu0 0.0
  %435 = vmatprep.subr.mxu0 0.0
  %436 = vmatpush1.msra.mxu0 0.0
  %437 = vmatprep.subr.mxu0 0.0
  %438 = vmatpush1.msra.mxu0 0.0
  %439 = vmatprep.subr.mxu0 0.0
  %440 = vmatpush1.msra.mxu0 0.0
  %441 = vmatprep.subr.mxu0 0.0
  %442 = vmatpush1.msra.mxu0 0.0
  %443 = vmatprep.subr.mxu0 0.0
  %444 = vmatpush1.msra.mxu0 0.0
  %445 = vmatprep.subr.mxu0 0.0
  %446 = vmatpush1.msra.mxu0 0.0
  %447 = vmatprep.subr.mxu0 0.0
  %448 = vmatpush1.msra.mxu0 0.0
  %449 = vmatprep.subr.mxu0 0.0
  %450 = vmatpush1.msra.mxu0 0.0
  %451 = vmatprep.subr.mxu0 0.0
  %452 = vmatpush1.msra.mxu0 0.0
  %453 = vmatprep.subr.mxu0 0.0
  %454 = vmatpush1.msra.mxu0 0.0
  %455 = vmatprep.subr.mxu0 0.0
  %456 = vmatpush1.msra.mxu0 0.0
  %457 = vmatprep.mubr.f32.mxu0 0.0
  %458 = vmatmul.mubr.f32.gmra.mrb[0].mxu0 %v47
  %v459 = vpop.f32.mrb[0].mxu0
  %v460 = vadd.f32 %v33, %v459
  %v461 = vpop.f32.mrb[0].mxu0
  %v462 = vadd.f32 %v33, %v461
  %463 = vmatprep.mubr.f32.mxu0 0.0
  %464 = vmatmul.mubr.f32.gmra.mrb[0].mxu0 %v50
  %v465 = vpop.f32.mrb[0].mxu0
  %v466 = vadd.f32 %v38, %v465
  %v467 = vpop.f32.mrb[0].mxu0
  %v468 = vadd.f32 %v38, %v467
  %469 = vmatprep.mubr.f32.mxu0 0.0
  %470 = vmatmul.mubr.f32.gmra.mrb[0].mxu0 %v53
  %v471 = vpop.f32.mrb[0].mxu0
  %v472 = vadd.f32 %v43, %v471
  %v473 = vpop.f32.mrb[0].mxu0
  %v474 = vadd.f32 %v43, %v473
  %475 = vdwg.mxu0
  %s476 = scalar_lea.vmem %s1, 32
  %v477 = vld [vmem:[%s476] sm:$0xff]
  %v478 = vld [vmem:[%s476 + $0x8] sm:$0xff]
  %v479 = vld [vmem:[%s476 + $0x10] sm:$0xff]
  %v480 = vld [vmem:[%s476 + $0x18] sm:$0xff]
  %481 = vmatprep.subr.mxu0 0.0
  %482 = vmatpush1.msra.mxu0 %v477
  %483 = vmatprep.subr.mxu0 0.0
  %484 = vmatpush1.msra.mxu0 %v478
  %485 = vmatprep.subr.mxu0 0.0
  %486 = vmatpush1.msra.mxu0 %v479
  %487 = vmatprep.subr.mxu0 0.0
  %488 = vmatpush1.msra.mxu0 %v480
  %489 = vmatprep.subr.mxu0 0.0
  %490 = vmatpush1.msra.mxu0 0.0
  %491 = vmatprep.subr.mxu0 0.0
  %492 = vmatpush1.msra.mxu0 0.0
  %493 = vmatprep.subr.mxu0 0.0
  %494 = vmatpush1.msra.mxu0 0.0
  %495 = vmatprep.subr.mxu0 0.0
  %496 = vmatpush1.msra.mxu0 0.0
  %497 = vmatprep.subr.mxu0 0.0
  %498 = vmatpush1.msra.mxu0 0.0
  %499 = vmatprep.subr.mxu0 0.0
  %500 = vmatpush1.msra.mxu0 0.0
  %501 = vmatprep.subr.mxu0 0.0
  %502 = vmatpush1.msra.mxu0 0.0
  %503 = vmatprep.subr.mxu0 0.0
  %504 = vmatpush1.msra.mxu0 0.0
  %505 = vmatprep.subr.mxu0 0.0
  %506 = vmatpush1.msra.mxu0 0.0
  %507 = vmatprep.subr.mxu0 0.0
  %508 = vmatpush1.msra.mxu0 0.0
  %509 = vmatprep.subr.mxu0 0.0
  %510 = vmatpush1.msra.mxu0 0.0
  %511 = vmatprep.subr.mxu0 0.0
  %512 = vmatpush1.msra.mxu0 0.0
  %513 = vmatprep.subr.mxu0 0.0
  %514 = vmatpush1.msra.mxu0 0.0
  %515 = vmatprep.subr.mxu0 0.0
  %516 = vmatpush1.msra.mxu0 0.0
  %517 = vmatprep.subr.mxu0 0.0
  %518 = vmatpush1.msra.mxu0 0.0
  %519 = vmatprep.subr.mxu0 0.0
  %520 = vmatpush1.msra.mxu0 0.0
  %521 = vmatprep.subr.mxu0 0.0
  %522 = vmatpush1.msra.mxu0 0.0
  %523 = vmatprep.subr.mxu0 0.0
  %524 = vmatpush1.msra.mxu0 0.0
  %525 = vmatprep.subr.mxu0 0.0
  %526 = vmatpush1.msra.mxu0 0.0
  %527 = vmatprep.subr.mxu0 0.0
  %528 = vmatpush1.msra.mxu0 0.0
  %529 = vmatprep.subr.mxu0 0.0
  %530 = vmatpush1.msra.mxu0 0.0
  %531 = vmatprep.subr.mxu0 0.0
  %532 = vmatpush1.msra.mxu0 0.0
  %533 = vmatprep.subr.mxu0 0.0
  %534 = vmatpush1.msra.mxu0 0.0
  %535 = vmatprep.subr.mxu0 0.0
  %536 = vmatpush1.msra.mxu0 0.0
  %537 = vmatprep.subr.mxu0 0.0
  %538 = vmatpush1.msra.mxu0 0.0
  %539 = vmatprep.subr.mxu0 0.0
  %540 = vmatpush1.msra.mxu0 0.0
  %541 = vmatprep.subr.mxu0 0.0
  %542 = vmatpush1.msra.mxu0 0.0
  %543 = vmatprep.subr.mxu0 0.0
  %544 = vmatpush1.msra.mxu0 0.0
  %545 = vmatprep.mubr.f32.mxu0 0.0
  %546 = vmatmul.mubr.f32.gmra.mrb[0].mxu0 %v161
  %v547 = vpop.f32.mrb[0].mxu0
  %v548 = vadd.f32 %v144, %v547
  %v549 = vpop.f32.mrb[0].mxu0
  %550 = vmatprep.mubr.f32.mxu0 0.0
  %551 = vmatmul.mubr.f32.gmra.mrb[0].mxu0 %v163
  %v552 = vpop.f32.mrb[0].mxu0
  %v553 = vadd.f32 %v148, %v552
  %v554 = vpop.f32.mrb[0].mxu0
  %555 = vmatprep.mubr.f32.mxu0 0.0
  %556 = vmatmul.mubr.f32.gmra.mrb[0].mxu0 %v165
  %v557 = vpop.f32.mrb[0].mxu0
  %v558 = vadd.f32 %v152, %v557
  %v559 = vpop.f32.mrb[0].mxu0
  %560 = vdwg.mxu0
  %s561 = scalar_lea.vmem %s2, 64
  %v562 = vld [vmem:[%s561] sm:$0xff]
  %v563 = vld [vmem:[%s561 + $0x8] sm:$0xff]
  %v564 = vld [vmem:[%s561 + $0x10] sm:$0xff]
  %v565 = vld [vmem:[%s561 + $0x18] sm:$0xff]
  %v566 = vld [vmem:[%s561 + $0x20] sm:$0xff]
  %v567 = vld [vmem:[%s561 + $0x28] sm:$0xff]
  %v568 = vld [vmem:[%s561 + $0x30] sm:$0xff]
  %v569 = vld [vmem:[%s561 + $0x38] sm:$0xff]
  %570 = vmatprep.subr.mxu0 0.0
  %571 = vmatpush1.msra.mxu0 %v562
  %572 = vmatprep.subr.mxu0 0.0
  %573 = vmatpush1.msra.mxu0 %v563
  %574 = vmatprep.subr.mxu0 0.0
  %575 = vmatpush1.msra.mxu0 %v564
  %576 = vmatprep.subr.mxu0 0.0
  %577 = vmatpush1.msra.mxu0 %v565
  %578 = vmatprep.subr.mxu0 0.0
  %579 = vmatpush1.msra.mxu0 %v566
  %580 = vmatprep.subr.mxu0 0.0
  %581 = vmatpush1.msra.mxu0 %v567
  %582 = vmatprep.subr.mxu0 0.0
  %583 = vmatpush1.msra.mxu0 %v568
  %584 = vmatprep.subr.mxu0 0.0
  %585 = vmatpush1.msra.mxu0 %v569
  %586 = vmatprep.subr.mxu0 0.0
  %587 = vmatpush1.msra.mxu0 0.0
  %588 = vmatprep.subr.mxu0 0.0
  %589 = vmatpush1.msra.mxu0 0.0
  %590 = vmatprep.subr.mxu0 0.0
  %591 = vmatpush1.msra.mxu0 0.0
  %592 = vmatprep.subr.mxu0 0.0
  %593 = vmatpush1.msra.mxu0 0.0
  %594 = vmatprep.subr.mxu0 0.0
  %595 = vmatpush1.msra.mxu0 0.0
  %596 = vmatprep.subr.mxu0 0.0
  %597 = vmatpush1.msra.mxu0 0.0
  %598 = vmatprep.subr.mxu0 0.0
  %599 = vmatpush1.msra.mxu0 0.0
  %600 = vmatprep.subr.mxu0 0.0
  %601 = vmatpush1.msra.mxu0 0.0
  %602 = vmatprep.subr.mxu0 0.0
  %603 = vmatpush1.msra.mxu0 0.0
  %604 = vmatprep.subr.mxu0 0.0
  %605 = vmatpush1.msra.mxu0 0.0
  %606 = vmatprep.subr.mxu0 0.0
  %607 = vmatpush1.msra.mxu0 0.0
  %608 = vmatprep.subr.mxu0 0.0
  %609 = vmatpush1.msra.mxu0 0.0
  %610 = vmatprep.subr.mxu0 0.0
  %611 = vmatpush1.msra.mxu0 0.0
  %612 = vmatprep.subr.mxu0 0.0
  %613 = vmatpush1.msra.mxu0 0.0
  %614 = vmatprep.subr.mxu0 0.0
  %615 = vmatpush1.msra.mxu0 0.0
  %616 = vmatprep.subr.mxu0 0.0
  %617 = vmatpush1.msra.mxu0 0.0
  %618 = vmatprep.subr.mxu0 0.0
  %619 = vmatpush1.msra.mxu0 0.0
  %620 = vmatprep.subr.mxu0 0.0
  %621 = vmatpush1.msra.mxu0 0.0
  %622 = vmatprep.subr.mxu0 0.0
  %623 = vmatpush1.msra.mxu0 0.0
  %624 = vmatprep.subr.mxu0 0.0
  %625 = vmatpush1.msra.mxu0 0.0
  %626 = vmatprep.subr.mxu0 0.0
  %627 = vmatpush1.msra.mxu0 0.0
  %628 = vmatprep.subr.mxu0 0.0
  %629 = vmatpush1.msra.mxu0 0.0
  %630 = vmatprep.subr.mxu0 0.0
  %631 = vmatpush1.msra.mxu0 0.0
  %632 = vmatprep.subr.mxu0 0.0
  %633 = vmatpush1.msra.mxu0 0.0
  %634 = vmatprep.mubr.f32.mxu0 0.0
  %635 = vmatmul.mubr.f32.gmra.mrb[0].mxu0 %v274
  %v636 = vpop.f32.mrb[0].mxu0
  %v637 = vadd.f32 %v257, %v636
  %v638 = vpop.f32.mrb[0].mxu0
  %639 = vmatprep.mubr.f32.mxu0 0.0
  %640 = vmatmul.mubr.f32.gmra.mrb[0].mxu0 %v276
  %v641 = vpop.f32.mrb[0].mxu0
  %v642 = vadd.f32 %v261, %v641
  %v643 = vpop.f32.mrb[0].mxu0
  %644 = vmatprep.mubr.f32.mxu0 0.0
  %645 = vmatmul.mubr.f32.gmra.mrb[0].mxu0 %v278
  %v646 = vpop.f32.mrb[0].mxu0
  %v647 = vadd.f32 %v265, %v646
  %v648 = vpop.f32.mrb[0].mxu0
  %649 = vdwg.mxu0
  %653 = vrot.lane.b32.xlu0 %v637, 64
  %v654 = vpop.permute.xlu0 %653
  %655 = vrot.lane.b32.xlu0 %v642, 64
  %v656 = vpop.permute.xlu0 %655
  %657 = vrot.lane.b32.xlu0 %v647, 64
  %v658 = vpop.permute.xlu0 %657
  %v662 = vsel %vm273, %v548, %v654
  %v663 = vsel %vm273, %v553, %v656
  %v664 = vsel %vm273, %v558, %v658
  %v665 = vsel %vm375, %v662, 0.0
  %v666 = vsel %vm375, %v663, 0.0
  %v667 = vsel %vm375, %v664, 0.0
  %s668 = scalar_lea.vmem %s5, 72
  %669 = vst [vmem:[%s668] sm:$0xff] %v460
  %670 = vst [vmem:[%s668 + $0x8] sm:$0xff] %v462
  %671 = vst [vmem:[%s668 + $0x10] sm:$0xff] %v665
  %672 = vst [vmem:[%s668 + $0x18] sm:$0xff] %v466
  %673 = vst [vmem:[%s668 + $0x20] sm:$0xff] %v468
  %674 = vst [vmem:[%s668 + $0x28] sm:$0xff] %v666
  %675 = vst [vmem:[%s668 + $0x30] sm:$0x1f] %v472
  %676 = vst [vmem:[%s668 + $0x38] sm:$0x1f] %v474
  %677 = vst [vmem:[%s668 + $0x40] sm:$0x1f] %v667
  // Predicated region
  $region22: #{tpu_custom_call.1} parent=0 // pred_check
    _
  $region23: #{tpu_custom_call.1} parent=0 // pred_check_branch
    %679 = sbr.rel (0) target = $region25
  $region24: #{tpu_custom_call.1} parent=0 // pred_region
    _
  $region25: #{tpu_custom_call.1} parent=0 // pred_fallthru
    _
  // Predicated region
  $region26: #{tpu_custom_call.1} parent=0 // pred_check
    _
  $region27: #{tpu_custom_call.1} parent=0 // pred_check_branch
    %681 = sbr.rel (0) target = $region29
  $region28: #{tpu_custom_call.1} parent=0 // pred_region
    _
  $region29: #{tpu_custom_call.1} parent=0 // pred_fallthru
    _

</llo_original>
